<compile_context>
chip_gen: v7x
topology: tpu7x:2x2x1
jax: 0.10.0
libtpu: 0.0.40
codegen_flags: <defaults>
</compile_context>

<pallas_src>
import functools

import jax
import jax.numpy as jnp
from jax.experimental import pallas as pl
from jax.experimental.pallas import tpu as pltpu


# -----------------------------------------------------------------------------
# Rodrigues rotation matrices (target vector = +z), plain JAX.
# O(B*L*9) flops — far too small to be worth a kernel launch; results are fed
# to the fused layer kernel via SMEM scalar prefetch.
# -----------------------------------------------------------------------------
def rotation_matrices_from_normals(normals):
    """normals: (M, 3) -> (M, 3, 3) rotation matrices aligning each normal to +z.

    Mirrors the torch reference exactly, including the *global* `if torch.any(v)`
    predicate and the (1 - c) / s**2 factor (NaN for normals (anti)parallel to +z,
    just like the original).
    # TODO(synk): consider a per-row s^2 > eps guard + explicit -z case.
    """
    a = normals.astype(jnp.float32)
    ax, ay, az = a[:, 0], a[:, 1], a[:, 2]
    vx, vy, vz = ay, -ax, jnp.zeros_like(ax)          # cross(a, (0, 0, 1))
    c = az                                            # dot(a, (0, 0, 1))
    s2 = vx * vx + vy * vy + vz * vz
    zero = jnp.zeros_like(ax)
    kmat = jnp.stack([
        jnp.stack([zero, -vz, vy], axis=-1),
        jnp.stack([vz, zero, -vx], axis=-1),
        jnp.stack([-vy, vx, zero], axis=-1)], axis=-2)            # (M, 3, 3)
    eye = jnp.broadcast_to(jnp.eye(3, dtype=jnp.float32), kmat.shape)
    rod = eye + kmat + jnp.matmul(kmat, kmat) * ((1.0 - c) / s2)[:, None, None]
    any_v = jnp.any(jnp.stack([vx, vy, vz], axis=-1) != 0.0)      # global predicate
    return jnp.where(any_v, rod, eye)


# -----------------------------------------------------------------------------
# Fused kernel: one (batch, point-tile, layer) grid step.
# -----------------------------------------------------------------------------
def _tutte_fused_kernel(rm_ref, pts_ref, layer_ref, total_ref, pts_sc):
    """Refs:
      rm_ref    : SMEM (B*L*9,) f32  row-major 3x3 rotation per (batch, layer)
      pts_ref   : VMEM (3, TS, 128)  input points of this tile (resident over L)
      layer_ref : VMEM (9, TS, 128)  packed per-layer output:
                                     rows 0-2 new points, 3-4 pred 2d, 5-8 2x2 dist
      total_ref : VMEM (9, TS, 128)  running 3x3 distortion (accumulator over L)
      pts_sc    : VMEM (3, TS, 128)  points carried across the L axis
    """
    b = pl.program_id(0)
    l = pl.program_id(2)
    num_layers = pl.num_programs(2)

    @pl.when(l == 0)
    def _init_points():
        pts_sc[...] = pts_ref[...]

    # Hoist the nine rotation-matrix entries once (cheap SMEM scalar reads).
    base = (b * num_layers + l) * 9
    r = [[rm_ref[base + 3 * i + j] for j in range(3)] for i in range(3)]

    p0 = pts_sc[0]
    p1 = pts_sc[1]
    p2 = pts_sc[2]

    # rot_points = R @ points
    rot0 = r[0][0] * p0 + r[0][1] * p1 + r[0][2] * p2
    rot1 = r[1][0] * p0 + r[1][1] * p1 + r[1][2] * p2
    rot2 = r[2][0] * p0 + r[2][1] * p1 + r[2][2] * p2

    # TODO(synk): TutteLayer (mesh/laplacian Tutte embedding) source not provided;
    # stubbed as identity warp with identity per-point 2x2 distortion (var_pred unused).
    pred0, pred1 = rot0, rot1
    one = jnp.ones_like(p0)
    zero = jnp.zeros_like(p0)
    d = [[one, zero], [zero, one]]

    # new_points = R^T @ [pred0, pred1, rot2]
    new_rows = [r[0][i] * pred0 + r[1][i] * pred1 + r[2][i] * rot2 for i in range(3)]

    # Direct, tile-aligned row stores (no concatenates).
    for i in range(3):
        pts_sc[i] = new_rows[i]          # carry to the next layer
        layer_ref[i] = new_rows[i]
    layer_ref[3] = pred0
    layer_ref[4] = pred1
    layer_ref[5] = d[0][0]
    layer_ref[6] = d[0][1]
    layer_ref[7] = d[1][0]
    layer_ref[8] = d[1][1]

    # cur_distortion C = R^T @ [[d, 0], [0, 1]] @ R, reassociated as M = D3 @ R,
    # C = R^T @ M; D3's third row/column is [0, 0, 1] so that part stays scalar.
    m = [[d[k][0] * r[0][j] + d[k][1] * r[1][j] for j in range(3)] for k in range(2)]
    c = [[r[0][i] * m[0][j] + r[1][i] * m[1][j] + r[2][i] * r[2][j]
          for j in range(3)] for i in range(3)]

    @pl.when(l == 0)
    def _init_total():
        for i in range(3):
            for j in range(3):
                total_ref[3 * i + j] = c[i][j]

    @pl.when(l > 0)
    def _accumulate_total():
        t = [total_ref[k] for k in range(9)]     # all reads precede the writes
        for i in range(3):
            for j in range(3):
                total_ref[3 * i + j] = (c[i][0] * t[j]
                                        + c[i][1] * t[3 + j]
                                        + c[i][2] * t[6 + j])


# -----------------------------------------------------------------------------
# Wrapper reproducing TuttePredictingNormal.forward (jitted, single pallas_call)
# -----------------------------------------------------------------------------
@functools.partial(jax.jit, static_argnames=("num_inner_layers", "prefix", "tile_points"))
def tutte_predicting_normal_forward(input_points, var_pred, normal_pred, *,
                                    num_inner_layers, prefix="", tile_points=1024):
    """input_points: (B, N, 3); var_pred: (B, V, L); normal_pred: (B, L, 3)."""
    del var_pred  # TODO(synk): feed to the real TutteLayer (via SMEM) once available.
    if tile_points % 1024 != 0:
        raise ValueError("tile_points must be a multiple of 1024")
    b, n, _ = input_points.shape
    l = num_inner_layers

    # (B*L, 3, 3) Rodrigues matrices, flattened for SMEM scalar prefetch.
    rm_flat = rotation_matrices_from_normals(
        normal_pred.reshape(b * l, 3)).reshape(-1)

    # Channels-first, lane-dense point layout: (B, 3, Npad//128, 128).
    ts = tile_points // 128                      # sublane-groups per point tile
    n_pad = ((n + tile_points - 1) // tile_points) * tile_points
    nt = n_pad // tile_points                    # grid tiles along the point axis
    pts = jnp.transpose(input_points.astype(jnp.float32), (0, 2, 1))
    pts = jnp.pad(pts, ((0, 0), (0, 0), (0, n_pad - n)))
    pts = pts.reshape(b, 3, n_pad // 128, 128)

    # VMEM per step ≈ (3 + 9 + 9 + 3 scratch) rows * tile_points * 4 B * 2 buffers
    # ≈ 0.2 MiB at tile_points=1024 — far below the v7x 32 MiB scoped limit.
    layer_out, total_out = pl.pallas_call(
        _tutte_fused_kernel,
        out_shape=(
            jax.ShapeDtypeStruct((b, l, 9, n_pad // 128, 128), jnp.float32),
            jax.ShapeDtypeStruct((b, 9, n_pad // 128, 128), jnp.float32),
        ),
        grid_spec=pltpu.PrefetchScalarGridSpec(
            num_scalar_prefetch=1,
            grid=(b, nt, l),
            in_specs=[
                pl.BlockSpec((None, 3, ts, 128),
                             lambda bi, ni, li, rm: (bi, 0, ni, 0)),
            ],
            out_specs=(
                pl.BlockSpec((None, None, 9, ts, 128),
                             lambda bi, ni, li, rm: (bi, li, 0, ni, 0)),
                pl.BlockSpec((None, 9, ts, 128),
                             lambda bi, ni, li, rm: (bi, 0, ni, 0)),
            ),
            scratch_shapes=[pltpu.VMEM((3, ts, 128), jnp.float32)],
        ),
        compiler_params=pltpu.CompilerParams(
            dimension_semantics=("parallel", "parallel", "arbitrary")),
    )(rm_flat, pts)

    layer_flat = layer_out.reshape(b, l, 9, n_pad)[..., :n]
    total_flat = total_out.reshape(b, 9, n_pad)[..., :n]

    return_dict = {}
    for i in range(l):
        new_p = jnp.transpose(layer_flat[:, i, 0:3, :], (0, 2, 1))       # (B, N, 3)
        pred2 = jnp.transpose(layer_flat[:, i, 3:5, :], (0, 2, 1))       # (B, N, 2)
        dist2 = jnp.transpose(layer_flat[:, i, 5:9, :], (0, 2, 1)).reshape(b * n, 2, 2)
        return_dict[prefix + "pred_points_%d" % i] = new_p
        return_dict[prefix + "pred_2d_points_%d" % i] = pred2
        # TODO(synk): TutteLayer's mesh vertices unavailable; mirror the 2-D points.
        return_dict[prefix + "new_vertices_%d" % i] = pred2
        return_dict[prefix + "distortion%d" % (i + 1)] = dist2

    return_dict[prefix + "distortion"] = (
        jnp.transpose(total_flat, (0, 2, 1)).reshape(b * n, 3, 3))
    new_points = return_dict[prefix + "pred_points_%d" % (l - 1)]
    return new_points, return_dict


# -----------------------------------------------------------------------------
if __name__ == "__main__":
    B, N, L, V = 2, 200, 3, 8                    # batch, points, inner layers, var dim
    key = jax.random.PRNGKey(0)
    k1, k2, k3 = jax.random.split(key, 3)

    input_points = jax.random.normal(k1, (B, N, 3), jnp.float32)
    var_pred = jax.random.normal(k2, (B, V, L), jnp.float32)
    normal_raw = jax.random.normal(k3, (B, L, 3), jnp.float32)
    # unit normals so the Rodrigues matrices are true rotations
    normal_pred = normal_raw / jnp.linalg.norm(normal_raw, axis=-1, keepdims=True)

    new_points, rd = tutte_predicting_normal_forward(
        input_points, var_pred, normal_pred, num_inner_layers=L)

    jax.block_until_ready(new_points)
    jax.block_until_ready(rd["distortion"])

    assert new_points.shape == (B, N, 3)
    assert rd["distortion"].shape == (B * N, 3, 3)
    assert rd["pred_2d_points_0"].shape == (B, N, 2)
    assert rd["distortion1"].shape == (B * N, 2, 2)
    # With the identity TutteLayer stub and unit normals, the per-layer
    # rotate/un-rotate round-trip returns the input points and the total
    # distortion is R^T I R ... = I.
    assert jnp.allclose(new_points, input_points, atol=1e-3)
    assert jnp.allclose(rd["distortion"],
                        jnp.broadcast_to(jnp.eye(3), (B * N, 3, 3)), atol=1e-3)

    print("KERNEL_OK")
</pallas_src>

<mosaic_0001>
module attributes {stable_mosaic.version = 11 : i64} {
  func.func @_tutte_fused_kernel(%arg0: i32, %arg1: i32, %arg2: i32, %arg3: memref<54xf32, #tpu.memory_space<smem>>, %arg4: memref<1x3x8x128xf32, #tpu.memory_space<vmem>>, %arg5: memref<1x1x9x8x128xf32, #tpu.memory_space<vmem>>, %arg6: memref<1x9x8x128xf32, #tpu.memory_space<vmem>>, %arg7: memref<3x8x128xf32, #tpu.memory_space<vmem>>) attributes {dimension_semantics = [#tpu.dimension_semantics<parallel>, #tpu.dimension_semantics<parallel>, #tpu.dimension_semantics<arbitrary>], iteration_bounds = array<i64: 2, 1, 3>, scalar_prefetch = 1 : i64, scratch_operands = 1 : i64, tpu.core_type = #tpu.core_type<tc>, window_params = [{transform_indices = @transform_0, window_bounds = array<i64: 1, 3, 8, 128>}, {transform_indices = @transform_1, window_bounds = array<i64: 1, 1, 9, 8, 128>}, {transform_indices = @transform_2, window_bounds = array<i64: 1, 9, 8, 128>}]} {
    %c0_i32 = arith.constant 0 : i32
    %0 = arith.cmpi eq, %arg2, %c0_i32 : i32
    %1 = arith.extui %0 : i1 to i32
    %c0_i32_0 = arith.constant 0 : i32
    %2 = arith.cmpi ne, %1, %c0_i32_0 : i32
    scf.if %2 {
      %c0_75 = arith.constant 0 : index
      %c0_76 = arith.constant 0 : index
      %c0_77 = arith.constant 0 : index
      %c0_78 = arith.constant 0 : index
      %242 = vector.load %arg4[%c0_75, %c0_76, %c0_77, %c0_78] : memref<1x3x8x128xf32, #tpu.memory_space<vmem>>, vector<1x3x8x128xf32>
      %243 = vector.shape_cast %242 : vector<1x3x8x128xf32> to vector<3x8x128xf32>
      %c0_79 = arith.constant 0 : index
      %c0_80 = arith.constant 0 : index
      %c0_81 = arith.constant 0 : index
      %244 = vector.load %arg7[%c0_79, %c0_80, %c0_81] : memref<3x8x128xf32, #tpu.memory_space<vmem>>, vector<3x8x128xf32>
      tpu.vector_store %arg7[%c0_79, %c0_80, %c0_81], %243 {strides = array<i32>} : memref<3x8x128xf32, #tpu.memory_space<vmem>>, vector<3x8x128xf32>,
    } else {
    }
    %c3_i32 = arith.constant 3 : i32
    %3 = arith.muli %arg0, %c3_i32 : i32
    %4 = arith.addi %3, %arg2 : i32
    %c9_i32 = arith.constant 9 : i32
    %5 = arith.muli %4, %c9_i32 : i32
    %c0_i32_1 = arith.constant 0 : i32
    %6 = arith.addi %5, %c0_i32_1 : i32
    %c0_i32_2 = arith.constant 0 : i32
    %7 = arith.addi %6, %c0_i32_2 : i32
    %8 = arith.index_cast %7 : i32 to index
    %9 = memref.load %arg3[%8] : memref<54xf32, #tpu.memory_space<smem>>
    %c0_i32_3 = arith.constant 0 : i32
    %10 = arith.addi %5, %c0_i32_3 : i32
    %c1_i32 = arith.constant 1 : i32
    %11 = arith.addi %10, %c1_i32 : i32
    %12 = arith.index_cast %11 : i32 to index
    %13 = memref.load %arg3[%12] : memref<54xf32, #tpu.memory_space<smem>>
    %c0_i32_4 = arith.constant 0 : i32
    %14 = arith.addi %5, %c0_i32_4 : i32
    %c2_i32 = arith.constant 2 : i32
    %15 = arith.addi %14, %c2_i32 : i32
    %16 = arith.index_cast %15 : i32 to index
    %17 = memref.load %arg3[%16] : memref<54xf32, #tpu.memory_space<smem>>
    %c3_i32_5 = arith.constant 3 : i32
    %18 = arith.addi %5, %c3_i32_5 : i32
    %c0_i32_6 = arith.constant 0 : i32
    %19 = arith.addi %18, %c0_i32_6 : i32
    %20 = arith.index_cast %19 : i32 to index
    %21 = memref.load %arg3[%20] : memref<54xf32, #tpu.memory_space<smem>>
    %c3_i32_7 = arith.constant 3 : i32
    %22 = arith.addi %5, %c3_i32_7 : i32
    %c1_i32_8 = arith.constant 1 : i32
    %23 = arith.addi %22, %c1_i32_8 : i32
    %24 = arith.index_cast %23 : i32 to index
    %25 = memref.load %arg3[%24] : memref<54xf32, #tpu.memory_space<smem>>
    %c3_i32_9 = arith.constant 3 : i32
    %26 = arith.addi %5, %c3_i32_9 : i32
    %c2_i32_10 = arith.constant 2 : i32
    %27 = arith.addi %26, %c2_i32_10 : i32
    %28 = arith.index_cast %27 : i32 to index
    %29 = memref.load %arg3[%28] : memref<54xf32, #tpu.memory_space<smem>>
    %c6_i32 = arith.constant 6 : i32
    %30 = arith.addi %5, %c6_i32 : i32
    %c0_i32_11 = arith.constant 0 : i32
    %31 = arith.addi %30, %c0_i32_11 : i32
    %32 = arith.index_cast %31 : i32 to index
    %33 = memref.load %arg3[%32] : memref<54xf32, #tpu.memory_space<smem>>
    %c6_i32_12 = arith.constant 6 : i32
    %34 = arith.addi %5, %c6_i32_12 : i32
    %c1_i32_13 = arith.constant 1 : i32
    %35 = arith.addi %34, %c1_i32_13 : i32
    %36 = arith.index_cast %35 : i32 to index
    %37 = memref.load %arg3[%36] : memref<54xf32, #tpu.memory_space<smem>>
    %c6_i32_14 = arith.constant 6 : i32
    %38 = arith.addi %5, %c6_i32_14 : i32
    %c2_i32_15 = arith.constant 2 : i32
    %39 = arith.addi %38, %c2_i32_15 : i32
    %40 = arith.index_cast %39 : i32 to index
    %41 = memref.load %arg3[%40] : memref<54xf32, #tpu.memory_space<smem>>
    %c0 = arith.constant 0 : index
    %c0_16 = arith.constant 0 : index
    %c0_17 = arith.constant 0 : index
    %42 = vector.load %arg7[%c0, %c0_16, %c0_17] : memref<3x8x128xf32, #tpu.memory_space<vmem>>, vector<1x8x128xf32>
    %43 = vector.shape_cast %42 : vector<1x8x128xf32> to vector<8x128xf32>
    %c1 = arith.constant 1 : index
    %c0_18 = arith.constant 0 : index
    %c0_19 = arith.constant 0 : index
    %44 = vector.load %arg7[%c1, %c0_18, %c0_19] : memref<3x8x128xf32, #tpu.memory_space<vmem>>, vector<1x8x128xf32>
    %45 = vector.shape_cast %44 : vector<1x8x128xf32> to vector<8x128xf32>
    %c2 = arith.constant 2 : index
    %c0_20 = arith.constant 0 : index
    %c0_21 = arith.constant 0 : index
    %46 = vector.load %arg7[%c2, %c0_20, %c0_21] : memref<3x8x128xf32, #tpu.memory_space<vmem>>, vector<1x8x128xf32>
    %47 = vector.shape_cast %46 : vector<1x8x128xf32> to vector<8x128xf32>
    %48 = vector.broadcast %9 : f32 to vector<8x128xf32>
    %49 = arith.mulf %48, %43 : vector<8x128xf32>
    %50 = vector.broadcast %13 : f32 to vector<8x128xf32>
    %51 = arith.mulf %50, %45 : vector<8x128xf32>
    %52 = arith.addf %49, %51 : vector<8x128xf32>
    %53 = vector.broadcast %17 : f32 to vector<8x128xf32>
    %54 = arith.mulf %53, %47 : vector<8x128xf32>
    %55 = arith.addf %52, %54 : vector<8x128xf32>
    %56 = vector.broadcast %21 : f32 to vector<8x128xf32>
    %57 = arith.mulf %56, %43 : vector<8x128xf32>
    %58 = vector.broadcast %25 : f32 to vector<8x128xf32>
    %59 = arith.mulf %58, %45 : vector<8x128xf32>
    %60 = arith.addf %57, %59 : vector<8x128xf32>
    %61 = vector.broadcast %29 : f32 to vector<8x128xf32>
    %62 = arith.mulf %61, %47 : vector<8x128xf32>
    %63 = arith.addf %60, %62 : vector<8x128xf32>
    %64 = vector.broadcast %33 : f32 to vector<8x128xf32>
    %65 = arith.mulf %64, %43 : vector<8x128xf32>
    %66 = vector.broadcast %37 : f32 to vector<8x128xf32>
    %67 = arith.mulf %66, %45 : vector<8x128xf32>
    %68 = arith.addf %65, %67 : vector<8x128xf32>
    %69 = vector.broadcast %41 : f32 to vector<8x128xf32>
    %70 = arith.mulf %69, %47 : vector<8x128xf32>
    %71 = arith.addf %68, %70 : vector<8x128xf32>
    %cst = arith.constant 1.000000e+00 : f32
    %72 = vector.broadcast %cst : f32 to vector<8x128xf32>
    %cst_22 = arith.constant 0.000000e+00 : f32
    %73 = vector.broadcast %cst_22 : f32 to vector<8x128xf32>
    %74 = vector.broadcast %9 : f32 to vector<8x128xf32>
    %75 = arith.mulf %74, %55 : vector<8x128xf32>
    %76 = vector.broadcast %21 : f32 to vector<8x128xf32>
    %77 = arith.mulf %76, %63 : vector<8x128xf32>
    %78 = arith.addf %75, %77 : vector<8x128xf32>
    %79 = vector.broadcast %33 : f32 to vector<8x128xf32>
    %80 = arith.mulf %79, %71 : vector<8x128xf32>
    %81 = arith.addf %78, %80 : vector<8x128xf32>
    %82 = vector.broadcast %13 : f32 to vector<8x128xf32>
    %83 = arith.mulf %82, %55 : vector<8x128xf32>
    %84 = vector.broadcast %25 : f32 to vector<8x128xf32>
    %85 = arith.mulf %84, %63 : vector<8x128xf32>
    %86 = arith.addf %83, %85 : vector<8x128xf32>
    %87 = vector.broadcast %37 : f32 to vector<8x128xf32>
    %88 = arith.mulf %87, %71 : vector<8x128xf32>
    %89 = arith.addf %86, %88 : vector<8x128xf32>
    %90 = vector.broadcast %17 : f32 to vector<8x128xf32>
    %91 = arith.mulf %90, %55 : vector<8x128xf32>
    %92 = vector.broadcast %29 : f32 to vector<8x128xf32>
    %93 = arith.mulf %92, %63 : vector<8x128xf32>
    %94 = arith.addf %91, %93 : vector<8x128xf32>
    %95 = vector.broadcast %41 : f32 to vector<8x128xf32>
    %96 = arith.mulf %95, %71 : vector<8x128xf32>
    %97 = arith.addf %94, %96 : vector<8x128xf32>
    %c0_23 = arith.constant 0 : index
    %c0_24 = arith.constant 0 : index
    %c0_25 = arith.constant 0 : index
    %98 = vector.load %arg7[%c0_23, %c0_24, %c0_25] : memref<3x8x128xf32, #tpu.memory_space<vmem>>, vector<1x8x128xf32>
    %99 = vector.shape_cast %98 : vector<1x8x128xf32> to vector<8x128xf32>
    %100 = vector.shape_cast %81 : vector<8x128xf32> to vector<1x8x128xf32>
    tpu.vector_store %arg7[%c0_23, %c0_24, %c0_25], %100 {strides = array<i32>} : memref<3x8x128xf32, #tpu.memory_space<vmem>>, vector<1x8x128xf32>,
    %c0_26 = arith.constant 0 : index
    %c0_27 = arith.constant 0 : index
    %c0_28 = arith.constant 0 : index
    %c0_29 = arith.constant 0 : index
    %c0_30 = arith.constant 0 : index
    %101 = vector.load %arg5[%c0_26, %c0_27, %c0_28, %c0_29, %c0_30] : memref<1x1x9x8x128xf32, #tpu.memory_space<vmem>>, vector<1x1x1x8x128xf32>
    %102 = vector.shape_cast %101 : vector<1x1x1x8x128xf32> to vector<8x128xf32>
    %103 = vector.shape_cast %81 : vector<8x128xf32> to vector<1x1x1x8x128xf32>
    tpu.vector_store %arg5[%c0_26, %c0_27, %c0_28, %c0_29, %c0_30], %103 {strides = array<i32>} : memref<1x1x9x8x128xf32, #tpu.memory_space<vmem>>, vector<1x1x1x8x128xf32>,
    %c1_31 = arith.constant 1 : index
    %c0_32 = arith.constant 0 : index
    %c0_33 = arith.constant 0 : index
    %104 = vector.load %arg7[%c1_31, %c0_32, %c0_33] : memref<3x8x128xf32, #tpu.memory_space<vmem>>, vector<1x8x128xf32>
    %105 = vector.shape_cast %104 : vector<1x8x128xf32> to vector<8x128xf32>
    %106 = vector.shape_cast %89 : vector<8x128xf32> to vector<1x8x128xf32>
    tpu.vector_store %arg7[%c1_31, %c0_32, %c0_33], %106 {strides = array<i32>} : memref<3x8x128xf32, #tpu.memory_space<vmem>>, vector<1x8x128xf32>,
    %c0_34 = arith.constant 0 : index
    %c0_35 = arith.constant 0 : index
    %c1_36 = arith.constant 1 : index
    %c0_37 = arith.constant 0 : index
    %c0_38 = arith.constant 0 : index
    %107 = vector.load %arg5[%c0_34, %c0_35, %c1_36, %c0_37, %c0_38] : memref<1x1x9x8x128xf32, #tpu.memory_space<vmem>>, vector<1x1x1x8x128xf32>
    %108 = vector.shape_cast %107 : vector<1x1x1x8x128xf32> to vector<8x128xf32>
    %109 = vector.shape_cast %89 : vector<8x128xf32> to vector<1x1x1x8x128xf32>
    tpu.vector_store %arg5[%c0_34, %c0_35, %c1_36, %c0_37, %c0_38], %109 {strides = array<i32>} : memref<1x1x9x8x128xf32, #tpu.memory_space<vmem>>, vector<1x1x1x8x128xf32>,
    %c2_39 = arith.constant 2 : index
    %c0_40 = arith.constant 0 : index
    %c0_41 = arith.constant 0 : index
    %110 = vector.load %arg7[%c2_39, %c0_40, %c0_41] : memref<3x8x128xf32, #tpu.memory_space<vmem>>, vector<1x8x128xf32>
    %111 = vector.shape_cast %110 : vector<1x8x128xf32> to vector<8x128xf32>
    %112 = vector.shape_cast %97 : vector<8x128xf32> to vector<1x8x128xf32>
    tpu.vector_store %arg7[%c2_39, %c0_40, %c0_41], %112 {strides = array<i32>} : memref<3x8x128xf32, #tpu.memory_space<vmem>>, vector<1x8x128xf32>,
    %c0_42 = arith.constant 0 : index
    %c0_43 = arith.constant 0 : index
    %c2_44 = arith.constant 2 : index
    %c0_45 = arith.constant 0 : index
    %c0_46 = arith.constant 0 : index
    %113 = vector.load %arg5[%c0_42, %c0_43, %c2_44, %c0_45, %c0_46] : memref<1x1x9x8x128xf32, #tpu.memory_space<vmem>>, vector<1x1x1x8x128xf32>
    %114 = vector.shape_cast %113 : vector<1x1x1x8x128xf32> to vector<8x128xf32>
    %115 = vector.shape_cast %97 : vector<8x128xf32> to vector<1x1x1x8x128xf32>
    tpu.vector_store %arg5[%c0_42, %c0_43, %c2_44, %c0_45, %c0_46], %115 {strides = array<i32>} : memref<1x1x9x8x128xf32, #tpu.memory_space<vmem>>, vector<1x1x1x8x128xf32>,
    %c0_47 = arith.constant 0 : index
    %c0_48 = arith.constant 0 : index
    %c3 = arith.constant 3 : index
    %c0_49 = arith.constant 0 : index
    %c0_50 = arith.constant 0 : index
    %116 = vector.load %arg5[%c0_47, %c0_48, %c3, %c0_49, %c0_50] : memref<1x1x9x8x128xf32, #tpu.memory_space<vmem>>, vector<1x1x1x8x128xf32>
    %117 = vector.shape_cast %116 : vector<1x1x1x8x128xf32> to vector<8x128xf32>
    %118 = vector.shape_cast %55 : vector<8x128xf32> to vector<1x1x1x8x128xf32>
    tpu.vector_store %arg5[%c0_47, %c0_48, %c3, %c0_49, %c0_50], %118 {strides = array<i32>} : memref<1x1x9x8x128xf32, #tpu.memory_space<vmem>>, vector<1x1x1x8x128xf32>,
    %c0_51 = arith.constant 0 : index
    %c0_52 = arith.constant 0 : index
    %c4 = arith.constant 4 : index
    %c0_53 = arith.constant 0 : index
    %c0_54 = arith.constant 0 : index
    %119 = vector.load %arg5[%c0_51, %c0_52, %c4, %c0_53, %c0_54] : memref<1x1x9x8x128xf32, #tpu.memory_space<vmem>>, vector<1x1x1x8x128xf32>
    %120 = vector.shape_cast %119 : vector<1x1x1x8x128xf32> to vector<8x128xf32>
    %121 = vector.shape_cast %63 : vector<8x128xf32> to vector<1x1x1x8x128xf32>
    tpu.vector_store %arg5[%c0_51, %c0_52, %c4, %c0_53, %c0_54], %121 {strides = array<i32>} : memref<1x1x9x8x128xf32, #tpu.memory_space<vmem>>, vector<1x1x1x8x128xf32>,
    %c0_55 = arith.constant 0 : index
    %c0_56 = arith.constant 0 : index
    %c5 = arith.constant 5 : index
    %c0_57 = arith.constant 0 : index
    %c0_58 = arith.constant 0 : index
    %122 = vector.load %arg5[%c0_55, %c0_56, %c5, %c0_57, %c0_58] : memref<1x1x9x8x128xf32, #tpu.memory_space<vmem>>, vector<1x1x1x8x128xf32>
    %123 = vector.shape_cast %122 : vector<1x1x1x8x128xf32> to vector<8x128xf32>
    %124 = vector.shape_cast %72 : vector<8x128xf32> to vector<1x1x1x8x128xf32>
    tpu.vector_store %arg5[%c0_55, %c0_56, %c5, %c0_57, %c0_58], %124 {strides = array<i32>} : memref<1x1x9x8x128xf32, #tpu.memory_space<vmem>>, vector<1x1x1x8x128xf32>,
    %c0_59 = arith.constant 0 : index
    %c0_60 = arith.constant 0 : index
    %c6 = arith.constant 6 : index
    %c0_61 = arith.constant 0 : index
    %c0_62 = arith.constant 0 : index
    %125 = vector.load %arg5[%c0_59, %c0_60, %c6, %c0_61, %c0_62] : memref<1x1x9x8x128xf32, #tpu.memory_space<vmem>>, vector<1x1x1x8x128xf32>
    %126 = vector.shape_cast %125 : vector<1x1x1x8x128xf32> to vector<8x128xf32>
    %127 = vector.shape_cast %73 : vector<8x128xf32> to vector<1x1x1x8x128xf32>
    tpu.vector_store %arg5[%c0_59, %c0_60, %c6, %c0_61, %c0_62], %127 {strides = array<i32>} : memref<1x1x9x8x128xf32, #tpu.memory_space<vmem>>, vector<1x1x1x8x128xf32>,
    %c0_63 = arith.constant 0 : index
    %c0_64 = arith.constant 0 : index
    %c7 = arith.constant 7 : index
    %c0_65 = arith.constant 0 : index
    %c0_66 = arith.constant 0 : index
    %128 = vector.load %arg5[%c0_63, %c0_64, %c7, %c0_65, %c0_66] : memref<1x1x9x8x128xf32, #tpu.memory_space<vmem>>, vector<1x1x1x8x128xf32>
    %129 = vector.shape_cast %128 : vector<1x1x1x8x128xf32> to vector<8x128xf32>
    %130 = vector.shape_cast %73 : vector<8x128xf32> to vector<1x1x1x8x128xf32>
    tpu.vector_store %arg5[%c0_63, %c0_64, %c7, %c0_65, %c0_66], %130 {strides = array<i32>} : memref<1x1x9x8x128xf32, #tpu.memory_space<vmem>>, vector<1x1x1x8x128xf32>,
    %c0_67 = arith.constant 0 : index
    %c0_68 = arith.constant 0 : index
    %c8 = arith.constant 8 : index
    %c0_69 = arith.constant 0 : index
    %c0_70 = arith.constant 0 : index
    %131 = vector.load %arg5[%c0_67, %c0_68, %c8, %c0_69, %c0_70] : memref<1x1x9x8x128xf32, #tpu.memory_space<vmem>>, vector<1x1x1x8x128xf32>
    %132 = vector.shape_cast %131 : vector<1x1x1x8x128xf32> to vector<8x128xf32>
    %133 = vector.shape_cast %72 : vector<8x128xf32> to vector<1x1x1x8x128xf32>
    tpu.vector_store %arg5[%c0_67, %c0_68, %c8, %c0_69, %c0_70], %133 {strides = array<i32>} : memref<1x1x9x8x128xf32, #tpu.memory_space<vmem>>, vector<1x1x1x8x128xf32>,
    %134 = vector.broadcast %9 : f32 to vector<8x128xf32>
    %135 = arith.mulf %72, %134 : vector<8x128xf32>
    %136 = vector.broadcast %21 : f32 to vector<8x128xf32>
    %137 = arith.mulf %73, %136 : vector<8x128xf32>
    %138 = arith.addf %135, %137 : vector<8x128xf32>
    %139 = vector.broadcast %13 : f32 to vector<8x128xf32>
    %140 = arith.mulf %72, %139 : vector<8x128xf32>
    %141 = vector.broadcast %25 : f32 to vector<8x128xf32>
    %142 = arith.mulf %73, %141 : vector<8x128xf32>
    %143 = arith.addf %140, %142 : vector<8x128xf32>
    %144 = vector.broadcast %17 : f32 to vector<8x128xf32>
    %145 = arith.mulf %72, %144 : vector<8x128xf32>
    %146 = vector.broadcast %29 : f32 to vector<8x128xf32>
    %147 = arith.mulf %73, %146 : vector<8x128xf32>
    %148 = arith.addf %145, %147 : vector<8x128xf32>
    %149 = vector.broadcast %9 : f32 to vector<8x128xf32>
    %150 = arith.mulf %73, %149 : vector<8x128xf32>
    %151 = vector.broadcast %21 : f32 to vector<8x128xf32>
    %152 = arith.mulf %72, %151 : vector<8x128xf32>
    %153 = arith.addf %150, %152 : vector<8x128xf32>
    %154 = vector.broadcast %13 : f32 to vector<8x128xf32>
    %155 = arith.mulf %73, %154 : vector<8x128xf32>
    %156 = vector.broadcast %25 : f32 to vector<8x128xf32>
    %157 = arith.mulf %72, %156 : vector<8x128xf32>
    %158 = arith.addf %155, %157 : vector<8x128xf32>
    %159 = vector.broadcast %17 : f32 to vector<8x128xf32>
    %160 = arith.mulf %73, %159 : vector<8x128xf32>
    %161 = vector.broadcast %29 : f32 to vector<8x128xf32>
    %162 = arith.mulf %72, %161 : vector<8x128xf32>
    %163 = arith.addf %160, %162 : vector<8x128xf32>
    %164 = vector.broadcast %9 : f32 to vector<8x128xf32>
    %165 = arith.mulf %164, %138 : vector<8x128xf32>
    %166 = vector.broadcast %21 : f32 to vector<8x128xf32>
    %167 = arith.mulf %166, %153 : vector<8x128xf32>
    %168 = arith.addf %165, %167 : vector<8x128xf32>
    %169 = arith.mulf %33, %33 : f32
    %170 = vector.broadcast %169 : f32 to vector<8x128xf32>
    %171 = arith.addf %168, %170 : vector<8x128xf32>
    %172 = vector.broadcast %9 : f32 to vector<8x128xf32>
    %173 = arith.mulf %172, %143 : vector<8x128xf32>
    %174 = vector.broadcast %21 : f32 to vector<8x128xf32>
    %175 = arith.mulf %174, %158 : vector<8x128xf32>
    %176 = arith.addf %173, %175 : vector<8x128xf32>
    %177 = arith.mulf %33, %37 : f32
    %178 = vector.broadcast %177 : f32 to vector<8x128xf32>
    %179 = arith.addf %176, %178 : vector<8x128xf32>
    %180 = vector.broadcast %9 : f32 to vector<8x128xf32>
    %181 = arith.mulf %180, %148 : vector<8x128xf32>
    %182 = vector.broadcast %21 : f32 to vector<8x128xf32>
    %183 = arith.mulf %182, %163 : vector<8x128xf32>
    %184 = arith.addf %181, %183 : vector<8x128xf32>
    %185 = arith.mulf %33, %41 : f32
    %186 = vector.broadcast %185 : f32 to vector<8x128xf32>
    %187 = arith.addf %184, %186 : vector<8x128xf32>
    %188 = vector.broadcast %13 : f32 to vector<8x128xf32>
    %189 = arith.mulf %188, %138 : vector<8x128xf32>
    %190 = vector.broadcast %25 : f32 to vector<8x128xf32>
    %191 = arith.mulf %190, %153 : vector<8x128xf32>
    %192 = arith.addf %189, %191 : vector<8x128xf32>
    %193 = arith.mulf %37, %33 : f32
    %194 = vector.broadcast %193 : f32 to vector<8x128xf32>
    %195 = arith.addf %192, %194 : vector<8x128xf32>
    %196 = vector.broadcast %13 : f32 to vector<8x128xf32>
    %197 = arith.mulf %196, %143 : vector<8x128xf32>
    %198 = vector.broadcast %25 : f32 to vector<8x128xf32>
    %199 = arith.mulf %198, %158 : vector<8x128xf32>
    %200 = arith.addf %197, %199 : vector<8x128xf32>
    %201 = arith.mulf %37, %37 : f32
    %202 = vector.broadcast %201 : f32 to vector<8x128xf32>
    %203 = arith.addf %200, %202 : vector<8x128xf32>
    %204 = vector.broadcast %13 : f32 to vector<8x128xf32>
    %205 = arith.mulf %204, %148 : vector<8x128xf32>
    %206 = vector.broadcast %25 : f32 to vector<8x128xf32>
    %207 = arith.mulf %206, %163 : vector<8x128xf32>
    %208 = arith.addf %205, %207 : vector<8x128xf32>
    %209 = arith.mulf %37, %41 : f32
    %210 = vector.broadcast %209 : f32 to vector<8x128xf32>
    %211 = arith.addf %208, %210 : vector<8x128xf32>
    %212 = vector.broadcast %17 : f32 to vector<8x128xf32>
    %213 = arith.mulf %212, %138 : vector<8x128xf32>
    %214 = vector.broadcast %29 : f32 to vector<8x128xf32>
    %215 = arith.mulf %214, %153 : vector<8x128xf32>
    %216 = arith.addf %213, %215 : vector<8x128xf32>
    %217 = arith.mulf %41, %33 : f32
    %218 = vector.broadcast %217 : f32 to vector<8x128xf32>
    %219 = arith.addf %216, %218 : vector<8x128xf32>
    %220 = vector.broadcast %17 : f32 to vector<8x128xf32>
    %221 = arith.mulf %220, %143 : vector<8x128xf32>
    %222 = vector.broadcast %29 : f32 to vector<8x128xf32>
    %223 = arith.mulf %222, %158 : vector<8x128xf32>
    %224 = arith.addf %221, %223 : vector<8x128xf32>
    %225 = arith.mulf %41, %37 : f32
    %226 = vector.broadcast %225 : f32 to vector<8x128xf32>
    %227 = arith.addf %224, %226 : vector<8x128xf32>
    %228 = vector.broadcast %17 : f32 to vector<8x128xf32>
    %229 = arith.mulf %228, %148 : vector<8x128xf32>
    %230 = vector.broadcast %29 : f32 to vector<8x128xf32>
    %231 = arith.mulf %230, %163 : vector<8x128xf32>
    %232 = arith.addf %229, %231 : vector<8x128xf32>
    %233 = arith.mulf %41, %41 : f32
    %234 = vector.broadcast %233 : f32 to vector<8x128xf32>
    %235 = arith.addf %232, %234 : vector<8x128xf32>
    %c0_i32_71 = arith.constant 0 : i32
    %236 = arith.cmpi eq, %arg2, %c0_i32_71 : i32
    %237 = arith.extui %236 : i1 to i32
    %c0_i32_72 = arith.constant 0 : i32
    %238 = arith.cmpi ne, %237, %c0_i32_72 : i32
    scf.if %238 {
      %c0_75 = arith.constant 0 : index
      %c0_76 = arith.constant 0 : index
      %c0_77 = arith.constant 0 : index
      %c0_78 = arith.constant 0 : index
      %242 = vector.load %arg6[%c0_75, %c0_76, %c0_77, %c0_78] : memref<1x9x8x128xf32, #tpu.memory_space<vmem>>, vector<1x1x8x128xf32>
      %243 = vector.shape_cast %242 : vector<1x1x8x128xf32> to vector<8x128xf32>
      %244 = vector.shape_cast %171 : vector<8x128xf32> to vector<1x1x8x128xf32>
      tpu.vector_store %arg6[%c0_75, %c0_76, %c0_77, %c0_78], %244 {strides = array<i32>} : memref<1x9x8x128xf32, #tpu.memory_space<vmem>>, vector<1x1x8x128xf32>,
      %c0_79 = arith.constant 0 : index
      %c1_80 = arith.constant 1 : index
      %c0_81 = arith.constant 0 : index
      %c0_82 = arith.constant 0 : index
      %245 = vector.load %arg6[%c0_79, %c1_80, %c0_81, %c0_82] : memref<1x9x8x128xf32, #tpu.memory_space<vmem>>, vector<1x1x8x128xf32>
      %246 = vector.shape_cast %245 : vector<1x1x8x128xf32> to vector<8x128xf32>
      %247 = vector.shape_cast %179 : vector<8x128xf32> to vector<1x1x8x128xf32>
      tpu.vector_store %arg6[%c0_79, %c1_80, %c0_81, %c0_82], %247 {strides = array<i32>} : memref<1x9x8x128xf32, #tpu.memory_space<vmem>>, vector<1x1x8x128xf32>,
      %c0_83 = arith.constant 0 : index
      %c2_84 = arith.constant 2 : index
      %c0_85 = arith.constant 0 : index
      %c0_86 = arith.constant 0 : index
      %248 = vector.load %arg6[%c0_83, %c2_84, %c0_85, %c0_86] : memref<1x9x8x128xf32, #tpu.memory_space<vmem>>, vector<1x1x8x128xf32>
      %249 = vector.shape_cast %248 : vector<1x1x8x128xf32> to vector<8x128xf32>
      %250 = vector.shape_cast %187 : vector<8x128xf32> to vector<1x1x8x128xf32>
      tpu.vector_store %arg6[%c0_83, %c2_84, %c0_85, %c0_86], %250 {strides = array<i32>} : memref<1x9x8x128xf32, #tpu.memory_space<vmem>>, vector<1x1x8x128xf32>,
      %c0_87 = arith.constant 0 : index
      %c3_88 = arith.constant 3 : index
      %c0_89 = arith.constant 0 : index
      %c0_90 = arith.constant 0 : index
      %251 = vector.load %arg6[%c0_87, %c3_88, %c0_89, %c0_90] : memref<1x9x8x128xf32, #tpu.memory_space<vmem>>, vector<1x1x8x128xf32>
      %252 = vector.shape_cast %251 : vector<1x1x8x128xf32> to vector<8x128xf32>
      %253 = vector.shape_cast %195 : vector<8x128xf32> to vector<1x1x8x128xf32>
      tpu.vector_store %arg6[%c0_87, %c3_88, %c0_89, %c0_90], %253 {strides = array<i32>} : memref<1x9x8x128xf32, #tpu.memory_space<vmem>>, vector<1x1x8x128xf32>,
      %c0_91 = arith.constant 0 : index
      %c4_92 = arith.constant 4 : index
      %c0_93 = arith.constant 0 : index
      %c0_94 = arith.constant 0 : index
      %254 = vector.load %arg6[%c0_91, %c4_92, %c0_93, %c0_94] : memref<1x9x8x128xf32, #tpu.memory_space<vmem>>, vector<1x1x8x128xf32>
      %255 = vector.shape_cast %254 : vector<1x1x8x128xf32> to vector<8x128xf32>
      %256 = vector.shape_cast %203 : vector<8x128xf32> to vector<1x1x8x128xf32>
      tpu.vector_store %arg6[%c0_91, %c4_92, %c0_93, %c0_94], %256 {strides = array<i32>} : memref<1x9x8x128xf32, #tpu.memory_space<vmem>>, vector<1x1x8x128xf32>,
      %c0_95 = arith.constant 0 : index
      %c5_96 = arith.constant 5 : index
      %c0_97 = arith.constant 0 : index
      %c0_98 = arith.constant 0 : index
      %257 = vector.load %arg6[%c0_95, %c5_96, %c0_97, %c0_98] : memref<1x9x8x128xf32, #tpu.memory_space<vmem>>, vector<1x1x8x128xf32>
      %258 = vector.shape_cast %257 : vector<1x1x8x128xf32> to vector<8x128xf32>
      %259 = vector.shape_cast %211 : vector<8x128xf32> to vector<1x1x8x128xf32>
      tpu.vector_store %arg6[%c0_95, %c5_96, %c0_97, %c0_98], %259 {strides = array<i32>} : memref<1x9x8x128xf32, #tpu.memory_space<vmem>>, vector<1x1x8x128xf32>,
      %c0_99 = arith.constant 0 : index
      %c6_100 = arith.constant 6 : index
      %c0_101 = arith.constant 0 : index
      %c0_102 = arith.constant 0 : index
      %260 = vector.load %arg6[%c0_99, %c6_100, %c0_101, %c0_102] : memref<1x9x8x128xf32, #tpu.memory_space<vmem>>, vector<1x1x8x128xf32>
      %261 = vector.shape_cast %260 : vector<1x1x8x128xf32> to vector<8x128xf32>
      %262 = vector.shape_cast %219 : vector<8x128xf32> to vector<1x1x8x128xf32>
      tpu.vector_store %arg6[%c0_99, %c6_100, %c0_101, %c0_102], %262 {strides = array<i32>} : memref<1x9x8x128xf32, #tpu.memory_space<vmem>>, vector<1x1x8x128xf32>,
      %c0_103 = arith.constant 0 : index
      %c7_104 = arith.constant 7 : index
      %c0_105 = arith.constant 0 : index
      %c0_106 = arith.constant 0 : index
      %263 = vector.load %arg6[%c0_103, %c7_104, %c0_105, %c0_106] : memref<1x9x8x128xf32, #tpu.memory_space<vmem>>, vector<1x1x8x128xf32>
      %264 = vector.shape_cast %263 : vector<1x1x8x128xf32> to vector<8x128xf32>
      %265 = vector.shape_cast %227 : vector<8x128xf32> to vector<1x1x8x128xf32>
      tpu.vector_store %arg6[%c0_103, %c7_104, %c0_105, %c0_106], %265 {strides = array<i32>} : memref<1x9x8x128xf32, #tpu.memory_space<vmem>>, vector<1x1x8x128xf32>,
      %c0_107 = arith.constant 0 : index
      %c8_108 = arith.constant 8 : index
      %c0_109 = arith.constant 0 : index
      %c0_110 = arith.constant 0 : index
      %266 = vector.load %arg6[%c0_107, %c8_108, %c0_109, %c0_110] : memref<1x9x8x128xf32, #tpu.memory_space<vmem>>, vector<1x1x8x128xf32>
      %267 = vector.shape_cast %266 : vector<1x1x8x128xf32> to vector<8x128xf32>
      %268 = vector.shape_cast %235 : vector<8x128xf32> to vector<1x1x8x128xf32>
      tpu.vector_store %arg6[%c0_107, %c8_108, %c0_109, %c0_110], %268 {strides = array<i32>} : memref<1x9x8x128xf32, #tpu.memory_space<vmem>>, vector<1x1x8x128xf32>,
    } else {
    }
    %c0_i32_73 = arith.constant 0 : i32
    %239 = arith.cmpi sgt, %arg2, %c0_i32_73 : i32
    %240 = arith.extui %239 : i1 to i32
    %c0_i32_74 = arith.constant 0 : i32
    %241 = arith.cmpi ne, %240, %c0_i32_74 : i32
    scf.if %241 {
      %c0_75 = arith.constant 0 : index
      %c0_76 = arith.constant 0 : index
      %c0_77 = arith.constant 0 : index
      %c0_78 = arith.constant 0 : index
      %242 = vector.load %arg6[%c0_75, %c0_76, %c0_77, %c0_78] : memref<1x9x8x128xf32, #tpu.memory_space<vmem>>, vector<1x1x8x128xf32>
      %243 = vector.shape_cast %242 : vector<1x1x8x128xf32> to vector<8x128xf32>
      %c0_79 = arith.constant 0 : index
      %c1_80 = arith.constant 1 : index
      %c0_81 = arith.constant 0 : index
      %c0_82 = arith.constant 0 : index
      %244 = vector.load %arg6[%c0_79, %c1_80, %c0_81, %c0_82] : memref<1x9x8x128xf32, #tpu.memory_space<vmem>>, vector<1x1x8x128xf32>
      %245 = vector.shape_cast %244 : vector<1x1x8x128xf32> to vector<8x128xf32>
      %c0_83 = arith.constant 0 : index
      %c2_84 = arith.constant 2 : index
      %c0_85 = arith.constant 0 : index
      %c0_86 = arith.constant 0 : index
      %246 = vector.load %arg6[%c0_83, %c2_84, %c0_85, %c0_86] : memref<1x9x8x128xf32, #tpu.memory_space<vmem>>, vector<1x1x8x128xf32>
      %247 = vector.shape_cast %246 : vector<1x1x8x128xf32> to vector<8x128xf32>
      %c0_87 = arith.constant 0 : index
      %c3_88 = arith.constant 3 : index
      %c0_89 = arith.constant 0 : index
      %c0_90 = arith.constant 0 : index
      %248 = vector.load %arg6[%c0_87, %c3_88, %c0_89, %c0_90] : memref<1x9x8x128xf32, #tpu.memory_space<vmem>>, vector<1x1x8x128xf32>
      %249 = vector.shape_cast %248 : vector<1x1x8x128xf32> to vector<8x128xf32>
      %c0_91 = arith.constant 0 : index
      %c4_92 = arith.constant 4 : index
      %c0_93 = arith.constant 0 : index
      %c0_94 = arith.constant 0 : index
      %250 = vector.load %arg6[%c0_91, %c4_92, %c0_93, %c0_94] : memref<1x9x8x128xf32, #tpu.memory_space<vmem>>, vector<1x1x8x128xf32>
      %251 = vector.shape_cast %250 : vector<1x1x8x128xf32> to vector<8x128xf32>
      %c0_95 = arith.constant 0 : index
      %c5_96 = arith.constant 5 : index
      %c0_97 = arith.constant 0 : index
      %c0_98 = arith.constant 0 : index
      %252 = vector.load %arg6[%c0_95, %c5_96, %c0_97, %c0_98] : memref<1x9x8x128xf32, #tpu.memory_space<vmem>>, vector<1x1x8x128xf32>
      %253 = vector.shape_cast %252 : vector<1x1x8x128xf32> to vector<8x128xf32>
      %c0_99 = arith.constant 0 : index
      %c6_100 = arith.constant 6 : index
      %c0_101 = arith.constant 0 : index
      %c0_102 = arith.constant 0 : index
      %254 = vector.load %arg6[%c0_99, %c6_100, %c0_101, %c0_102] : memref<1x9x8x128xf32, #tpu.memory_space<vmem>>, vector<1x1x8x128xf32>
      %255 = vector.shape_cast %254 : vector<1x1x8x128xf32> to vector<8x128xf32>
      %c0_103 = arith.constant 0 : index
      %c7_104 = arith.constant 7 : index
      %c0_105 = arith.constant 0 : index
      %c0_106 = arith.constant 0 : index
      %256 = vector.load %arg6[%c0_103, %c7_104, %c0_105, %c0_106] : memref<1x9x8x128xf32, #tpu.memory_space<vmem>>, vector<1x1x8x128xf32>
      %257 = vector.shape_cast %256 : vector<1x1x8x128xf32> to vector<8x128xf32>
      %c0_107 = arith.constant 0 : index
      %c8_108 = arith.constant 8 : index
      %c0_109 = arith.constant 0 : index
      %c0_110 = arith.constant 0 : index
      %258 = vector.load %arg6[%c0_107, %c8_108, %c0_109, %c0_110] : memref<1x9x8x128xf32, #tpu.memory_space<vmem>>, vector<1x1x8x128xf32>
      %259 = vector.shape_cast %258 : vector<1x1x8x128xf32> to vector<8x128xf32>
      %260 = arith.mulf %171, %243 : vector<8x128xf32>
      %261 = arith.mulf %179, %249 : vector<8x128xf32>
      %262 = arith.addf %260, %261 : vector<8x128xf32>
      %263 = arith.mulf %187, %255 : vector<8x128xf32>
      %264 = arith.addf %262, %263 : vector<8x128xf32>
      %c0_111 = arith.constant 0 : index
      %c0_112 = arith.constant 0 : index
      %c0_113 = arith.constant 0 : index
      %c0_114 = arith.constant 0 : index
      %265 = vector.load %arg6[%c0_111, %c0_112, %c0_113, %c0_114] : memref<1x9x8x128xf32, #tpu.memory_space<vmem>>, vector<1x1x8x128xf32>
      %266 = vector.shape_cast %265 : vector<1x1x8x128xf32> to vector<8x128xf32>
      %267 = vector.shape_cast %264 : vector<8x128xf32> to vector<1x1x8x128xf32>
      tpu.vector_store %arg6[%c0_111, %c0_112, %c0_113, %c0_114], %267 {strides = array<i32>} : memref<1x9x8x128xf32, #tpu.memory_space<vmem>>, vector<1x1x8x128xf32>,
      %268 = arith.mulf %171, %245 : vector<8x128xf32>
      %269 = arith.mulf %179, %251 : vector<8x128xf32>
      %270 = arith.addf %268, %269 : vector<8x128xf32>
      %271 = arith.mulf %187, %257 : vector<8x128xf32>
      %272 = arith.addf %270, %271 : vector<8x128xf32>
      %c0_115 = arith.constant 0 : index
      %c1_116 = arith.constant 1 : index
      %c0_117 = arith.constant 0 : index
      %c0_118 = arith.constant 0 : index
      %273 = vector.load %arg6[%c0_115, %c1_116, %c0_117, %c0_118] : memref<1x9x8x128xf32, #tpu.memory_space<vmem>>, vector<1x1x8x128xf32>
      %274 = vector.shape_cast %273 : vector<1x1x8x128xf32> to vector<8x128xf32>
      %275 = vector.shape_cast %272 : vector<8x128xf32> to vector<1x1x8x128xf32>
      tpu.vector_store %arg6[%c0_115, %c1_116, %c0_117, %c0_118], %275 {strides = array<i32>} : memref<1x9x8x128xf32, #tpu.memory_space<vmem>>, vector<1x1x8x128xf32>,
      %276 = arith.mulf %171, %247 : vector<8x128xf32>
      %277 = arith.mulf %179, %253 : vector<8x128xf32>
      %278 = arith.addf %276, %277 : vector<8x128xf32>
      %279 = arith.mulf %187, %259 : vector<8x128xf32>
      %280 = arith.addf %278, %279 : vector<8x128xf32>
      %c0_119 = arith.constant 0 : index
      %c2_120 = arith.constant 2 : index
      %c0_121 = arith.constant 0 : index
      %c0_122 = arith.constant 0 : index
      %281 = vector.load %arg6[%c0_119, %c2_120, %c0_121, %c0_122] : memref<1x9x8x128xf32, #tpu.memory_space<vmem>>, vector<1x1x8x128xf32>
      %282 = vector.shape_cast %281 : vector<1x1x8x128xf32> to vector<8x128xf32>
      %283 = vector.shape_cast %280 : vector<8x128xf32> to vector<1x1x8x128xf32>
      tpu.vector_store %arg6[%c0_119, %c2_120, %c0_121, %c0_122], %283 {strides = array<i32>} : memref<1x9x8x128xf32, #tpu.memory_space<vmem>>, vector<1x1x8x128xf32>,
      %284 = arith.mulf %195, %243 : vector<8x128xf32>
      %285 = arith.mulf %203, %249 : vector<8x128xf32>
      %286 = arith.addf %284, %285 : vector<8x128xf32>
      %287 = arith.mulf %211, %255 : vector<8x128xf32>
      %288 = arith.addf %286, %287 : vector<8x128xf32>
      %c0_123 = arith.constant 0 : index
      %c3_124 = arith.constant 3 : index
      %c0_125 = arith.constant 0 : index
      %c0_126 = arith.constant 0 : index
      %289 = vector.load %arg6[%c0_123, %c3_124, %c0_125, %c0_126] : memref<1x9x8x128xf32, #tpu.memory_space<vmem>>, vector<1x1x8x128xf32>
      %290 = vector.shape_cast %289 : vector<1x1x8x128xf32> to vector<8x128xf32>
      %291 = vector.shape_cast %288 : vector<8x128xf32> to vector<1x1x8x128xf32>
      tpu.vector_store %arg6[%c0_123, %c3_124, %c0_125, %c0_126], %291 {strides = array<i32>} : memref<1x9x8x128xf32, #tpu.memory_space<vmem>>, vector<1x1x8x128xf32>,
      %292 = arith.mulf %195, %245 : vector<8x128xf32>
      %293 = arith.mulf %203, %251 : vector<8x128xf32>
      %294 = arith.addf %292, %293 : vector<8x128xf32>
      %295 = arith.mulf %211, %257 : vector<8x128xf32>
      %296 = arith.addf %294, %295 : vector<8x128xf32>
      %c0_127 = arith.constant 0 : index
      %c4_128 = arith.constant 4 : index
      %c0_129 = arith.constant 0 : index
      %c0_130 = arith.constant 0 : index
      %297 = vector.load %arg6[%c0_127, %c4_128, %c0_129, %c0_130] : memref<1x9x8x128xf32, #tpu.memory_space<vmem>>, vector<1x1x8x128xf32>
      %298 = vector.shape_cast %297 : vector<1x1x8x128xf32> to vector<8x128xf32>
      %299 = vector.shape_cast %296 : vector<8x128xf32> to vector<1x1x8x128xf32>
      tpu.vector_store %arg6[%c0_127, %c4_128, %c0_129, %c0_130], %299 {strides = array<i32>} : memref<1x9x8x128xf32, #tpu.memory_space<vmem>>, vector<1x1x8x128xf32>,
      %300 = arith.mulf %195, %247 : vector<8x128xf32>
      %301 = arith.mulf %203, %253 : vector<8x128xf32>
      %302 = arith.addf %300, %301 : vector<8x128xf32>
      %303 = arith.mulf %211, %259 : vector<8x128xf32>
      %304 = arith.addf %302, %303 : vector<8x128xf32>
      %c0_131 = arith.constant 0 : index
      %c5_132 = arith.constant 5 : index
      %c0_133 = arith.constant 0 : index
      %c0_134 = arith.constant 0 : index
      %305 = vector.load %arg6[%c0_131, %c5_132, %c0_133, %c0_134] : memref<1x9x8x128xf32, #tpu.memory_space<vmem>>, vector<1x1x8x128xf32>
      %306 = vector.shape_cast %305 : vector<1x1x8x128xf32> to vector<8x128xf32>
      %307 = vector.shape_cast %304 : vector<8x128xf32> to vector<1x1x8x128xf32>
      tpu.vector_store %arg6[%c0_131, %c5_132, %c0_133, %c0_134], %307 {strides = array<i32>} : memref<1x9x8x128xf32, #tpu.memory_space<vmem>>, vector<1x1x8x128xf32>,
      %308 = arith.mulf %219, %243 : vector<8x128xf32>
      %309 = arith.mulf %227, %249 : vector<8x128xf32>
      %310 = arith.addf %308, %309 : vector<8x128xf32>
      %311 = arith.mulf %235, %255 : vector<8x128xf32>
      %312 = arith.addf %310, %311 : vector<8x128xf32>
      %c0_135 = arith.constant 0 : index
      %c6_136 = arith.constant 6 : index
      %c0_137 = arith.constant 0 : index
      %c0_138 = arith.constant 0 : index
      %313 = vector.load %arg6[%c0_135, %c6_136, %c0_137, %c0_138] : memref<1x9x8x128xf32, #tpu.memory_space<vmem>>, vector<1x1x8x128xf32>
      %314 = vector.shape_cast %313 : vector<1x1x8x128xf32> to vector<8x128xf32>
      %315 = vector.shape_cast %312 : vector<8x128xf32> to vector<1x1x8x128xf32>
      tpu.vector_store %arg6[%c0_135, %c6_136, %c0_137, %c0_138], %315 {strides = array<i32>} : memref<1x9x8x128xf32, #tpu.memory_space<vmem>>, vector<1x1x8x128xf32>,
      %316 = arith.mulf %219, %245 : vector<8x128xf32>
      %317 = arith.mulf %227, %251 : vector<8x128xf32>
      %318 = arith.addf %316, %317 : vector<8x128xf32>
      %319 = arith.mulf %235, %257 : vector<8x128xf32>
      %320 = arith.addf %318, %319 : vector<8x128xf32>
      %c0_139 = arith.constant 0 : index
      %c7_140 = arith.constant 7 : index
      %c0_141 = arith.constant 0 : index
      %c0_142 = arith.constant 0 : index
      %321 = vector.load %arg6[%c0_139, %c7_140, %c0_141, %c0_142] : memref<1x9x8x128xf32, #tpu.memory_space<vmem>>, vector<1x1x8x128xf32>
      %322 = vector.shape_cast %321 : vector<1x1x8x128xf32> to vector<8x128xf32>
      %323 = vector.shape_cast %320 : vector<8x128xf32> to vector<1x1x8x128xf32>
      tpu.vector_store %arg6[%c0_139, %c7_140, %c0_141, %c0_142], %323 {strides = array<i32>} : memref<1x9x8x128xf32, #tpu.memory_space<vmem>>, vector<1x1x8x128xf32>,
      %324 = arith.mulf %219, %247 : vector<8x128xf32>
      %325 = arith.mulf %227, %253 : vector<8x128xf32>
      %326 = arith.addf %324, %325 : vector<8x128xf32>
      %327 = arith.mulf %235, %259 : vector<8x128xf32>
      %328 = arith.addf %326, %327 : vector<8x128xf32>
      %c0_143 = arith.constant 0 : index
      %c8_144 = arith.constant 8 : index
      %c0_145 = arith.constant 0 : index
      %c0_146 = arith.constant 0 : index
      %329 = vector.load %arg6[%c0_143, %c8_144, %c0_145, %c0_146] : memref<1x9x8x128xf32, #tpu.memory_space<vmem>>, vector<1x1x8x128xf32>
      %330 = vector.shape_cast %329 : vector<1x1x8x128xf32> to vector<8x128xf32>
      %331 = vector.shape_cast %328 : vector<8x128xf32> to vector<1x1x8x128xf32>
      tpu.vector_store %arg6[%c0_143, %c8_144, %c0_145, %c0_146], %331 {strides = array<i32>} : memref<1x9x8x128xf32, #tpu.memory_space<vmem>>, vector<1x1x8x128xf32>,
    } else {
    }
    return
  }
  func.func @transform_0(%arg0: i32, %arg1: i32, %arg2: i32, %arg3: memref<54xf32, #tpu.memory_space<smem>>) -> (i32, i32, i32, i32) {
    %c0_i32 = arith.constant 0 : i32
    %c0_i32_0 = arith.constant 0 : i32
    %c0_i32_1 = arith.constant 0 : i32
    return %arg0, %c0_i32, %arg1, %c0_i32_0 : i32, i32, i32, i32
  }
  func.func @transform_1(%arg0: i32, %arg1: i32, %arg2: i32, %arg3: memref<54xf32, #tpu.memory_space<smem>>) -> (i32, i32, i32, i32, i32) {
    %c0_i32 = arith.constant 0 : i32
    %c0_i32_0 = arith.constant 0 : i32
    %c0_i32_1 = arith.constant 0 : i32
    return %arg0, %arg2, %c0_i32, %arg1, %c0_i32_0 : i32, i32, i32, i32, i32
  }
  func.func @transform_2(%arg0: i32, %arg1: i32, %arg2: i32, %arg3: memref<54xf32, #tpu.memory_space<smem>>) -> (i32, i32, i32, i32) {
    %c0_i32 = arith.constant 0 : i32
    %c0_i32_0 = arith.constant 0 : i32
    %c0_i32_1 = arith.constant 0 : i32
    return %arg0, %c0_i32, %arg1, %c0_i32_0 : i32, i32, i32, i32
  }
}

</mosaic_0001>

<llo_original>
// kernel: tutte_predicting_normal_forward.1
$region0: #{tutte_predicting_normal_forward.1}
  #allocation0 [shape = 'u32[]', space=smem, size = 0x4, offset = 0x4, fixed_abs, tag = 'smem constant byte address 0x4 - core index']
  #allocation1 [shape = 'u32[144,128]{1,0:T(1,128)}', space=vmem, size = 0x12000, scoped, tag = 'internal scratch']
  #allocation2 [shape = 'f32[3,8,128]{2,1,0:T(8,128)}', space=vmem, size = 0x3000, scoped, tag = 'scratch operand']
  #allocation3 [shape = 's32[1]{0}', space=sflag, size = 0x4, scoped, tag = 'scoped memory for tutte_predicting_normal_forward.1']
  #allocation4 [shape = 'u8[512]{0}', space=smem, size = 0x200, scoped, tag = 'prefetched SMEM operand 0']
  %s0 = inlined_call_operand.vmem [shape: f32[54], index: 0, kind: input, shape index: {}]
  %s1 = inlined_call_operand.vmem [shape: f32[2,3,8,128], index: 1, kind: input, shape index: {}]
  %s2 = inlined_call_operand.vmem [shape: f32[2,3,9,8,128], index: 2, kind: output, shape index: {0}]
  %s3 = inlined_call_operand.vmem [shape: f32[2,9,8,128], index: 3, kind: output, shape index: {1}]
  %4 = xla_tuple %s2, %s3
  %s5 = sld [smem:[#allocation0]]
  $region57: #{tutte_predicting_normal_forward.1} parent=0
    _
  %s7 = ssub.s32 1, %s5
  %s8 = scalar_select 0, %s7, %s5
  %s9 = sshll.u32 %s0, 4
  %s10 = int_to_ptr.vmem [resolvable:$true] %s9
  %12 = dma.vmem_to_smem %s10, 16, [#allocation4], [#allocation3]
  %13 = dma.done [#allocation3], 16
  %14 = sfence
  loop: start=0, step=1, limit=8
  $region2: #{tutte_predicting_normal_forward.1} parent=0 // loop_pre_header
    _
  $region3: #{tutte_predicting_normal_forward.1} parent=0 // loop_header
    %s16 = sphi 0, %s20
    %p17 = scmp.ge.s32.totalorder %s16, 8
    %s23 = sphi 0, %s42
    %s24 = sphi 0, %s38
    %s25 = sphi 0, %s34
    %s26 = sphi 0, %s23
    %s27 = sphi 0, %s24
    %s28 = sphi 0, %s25
    %s29 = sphi 0, %s26
    %s30 = sphi 0, %s27
    %s31 = sphi 0, %s28
    %s47 = sphi 0, %s49
    %s50 = sphi 0, %s47
    %s51 = sphi 0, %s50
    %s67 = sphi 0, %s51
    %s77 = sphi 0, %s79
    %s80 = sphi 0, %s77
    %s81 = sphi 0, %s80
    %s97 = sphi 0, %s81
    %s105 = sphi 0, %s107
    %s108 = sphi 0, %s105
    %s109 = sphi 0, %s108
    %s125 = sphi 0, %s109
  $region4: #{tutte_predicting_normal_forward.1} parent=0 // loop_header_branch
    %19 = sbr.rel (%p17) target = $region8
  $region5: #{tutte_predicting_normal_forward.1} parent=0 // loop_body
    %s21 = ssub.s32 %s16, 1
    %s22 = ssub.s32 %s16, 2
    %s32 = sadd.s32 1, %s25
    %p33 = scmp.ge.s32.totalorder %s32, 3
    %s34 = scalar_select %p33, 0, %s32
    %s35 = sadd.s32 1, %s24
    %s36 = scalar_select %p33, %s35, %s24
    %p37 = scmp.ge.s32.totalorder %s36, 1
    %s38 = scalar_select %p37, 0, %s36
    %s39 = sadd.s32 1, %s23
    %s40 = scalar_select %p37, %s39, %s23
    %p41 = scmp.ge.s32.totalorder %s40, 2
    %s42 = scalar_select %p41, 0, %s40
    %s43 = ssub.s32 %s23, %s42
    %s44 = ssub.s32 %s24, %s38
    %s45 = sor.u32 %s43, %s44
    %p46 = scmp.eq.s32.totalorder %s45, 0
    %s48 = sadd.s32 %s47, 1
    %s49 = scalar_select %p46, %s47, %s48
    %p52 = pneg %p46
    %p53 = scmp.eq.s32.totalorder %s16, 5
    %p54 = por %p52, %p53
    %p55 = scmp.ne.s32.totalorder %s47, %s50
    %p56 = scmp.eq.s32.totalorder %s16, 0
    %p57 = por %p55, %p56
    %p58 = scmp.ne.s32.totalorder %s47, %s50
    %p59 = scmp.eq.s32.totalorder %s21, 5
    %p60 = por %p58, %p59
    %p61 = scmp.ne.s32.totalorder %s50, %s51
    %p62 = scmp.eq.s32.totalorder %s21, 0
    %p63 = por %p61, %p62
    %p64 = scmp.ne.s32.totalorder %s50, %s51
    %p65 = scmp.eq.s32.totalorder %s22, 5
    %p66 = por %p64, %p65
    %p68 = scmp.ne.s32.totalorder %s51, %s67
    %p69 = scmp.eq.s32.totalorder %s22, 0
    %p70 = por %p68, %p69
    %s71 = ssub.s32 %s23, %s42
    %s72 = ssub.s32 %s25, %s34
    %s73 = sor.u32 %s71, %s72
    %s74 = ssub.s32 %s24, %s38
    %s75 = sor.u32 %s73, %s74
    %p76 = scmp.eq.s32.totalorder %s75, 0
    %s78 = sadd.s32 %s77, 1
    %s79 = scalar_select %p76, %s77, %s78
    %p82 = pneg %p76
    %p83 = scmp.eq.s32.totalorder %s16, 5
    %p84 = por %p82, %p83
    %p85 = scmp.ne.s32.totalorder %s77, %s80
    %p86 = scmp.eq.s32.totalorder %s16, 0
    %p87 = por %p85, %p86
    %p88 = scmp.ne.s32.totalorder %s77, %s80
    %p89 = scmp.eq.s32.totalorder %s21, 5
    %p90 = por %p88, %p89
    %p91 = scmp.ne.s32.totalorder %s80, %s81
    %p92 = scmp.eq.s32.totalorder %s21, 0
    %p93 = por %p91, %p92
    %p94 = scmp.ne.s32.totalorder %s80, %s81
    %p95 = scmp.eq.s32.totalorder %s22, 5
    %p96 = por %p94, %p95
    %p98 = scmp.ne.s32.totalorder %s81, %s97
    %p99 = scmp.eq.s32.totalorder %s22, 0
    %p100 = por %p98, %p99
    %s101 = ssub.s32 %s23, %s42
    %s102 = ssub.s32 %s24, %s38
    %s103 = sor.u32 %s101, %s102
    %p104 = scmp.eq.s32.totalorder %s103, 0
    %s106 = sadd.s32 %s105, 1
    %s107 = scalar_select %p104, %s105, %s106
    %p110 = pneg %p104
    %p111 = scmp.eq.s32.totalorder %s16, 5
    %p112 = por %p110, %p111
    %p113 = scmp.ne.s32.totalorder %s105, %s108
    %p114 = scmp.eq.s32.totalorder %s16, 0
    %p115 = por %p113, %p114
    %p116 = scmp.ne.s32.totalorder %s105, %s108
    %p117 = scmp.eq.s32.totalorder %s21, 5
    %p118 = por %p116, %p117
    %p119 = scmp.ne.s32.totalorder %s108, %s109
    %p120 = scmp.eq.s32.totalorder %s21, 0
    %p121 = por %p119, %p120
    %p122 = scmp.ne.s32.totalorder %s108, %s109
    %p123 = scmp.eq.s32.totalorder %s22, 5
    %p124 = por %p122, %p123
    %p126 = scmp.ne.s32.totalorder %s109, %s125
    %p127 = scmp.eq.s32.totalorder %s22, 0
    %p128 = por %p126, %p127
    %p129 = scmp.le.s32.totalorder 1, %s16
    %p130 = scmp.lt.s32.totalorder %s16, 7
    %p131 = pnand %p129, %p130
    %p132 = pneg %p131
    // Predicated region
    $region9: #{tutte_predicting_normal_forward.1} parent=5 // pred_check
      _
    $region10: #{tutte_predicting_normal_forward.1} parent=5 // pred_check_branch
      %134 = sbr.rel (%p131) target = $region12
    $region11: #{tutte_predicting_normal_forward.1} parent=5 // pred_region
      %s135 = ssub.s32 %s16, 1
    $region12: #{tutte_predicting_normal_forward.1} parent=5 // pred_fallthru
      _
    %p136 = scmp.lt.s32.totalorder %s16, 6
    // Predicated region
    $region13: #{tutte_predicting_normal_forward.1} parent=5 // pred_check
      %p137 = pneg %p136
    $region14: #{tutte_predicting_normal_forward.1} parent=5 // pred_check_branch
      %139 = sbr.rel (%p137) target = $region16
    $region15: #{tutte_predicting_normal_forward.1} parent=5 // pred_region
      // Predicated region
      $region17: #{tutte_predicting_normal_forward.1} parent=15 // pred_check
        %p140 = pneg %p57
      $region18: #{tutte_predicting_normal_forward.1} parent=15 // pred_check_branch
        %142 = sbr.rel (%p140) target = $region20
      $region19: #{tutte_predicting_normal_forward.1} parent=15 // pred_region
        %p143 = scmp.lt.s32.totalorder %s23, 1
        %s144 = scalar_select %p143, %s23, 1
        %p145 = scmp.lt.s32.totalorder %s24, 0
        %s146 = scalar_select %p145, %s24, 0
        %s147 = smul.addr %s144, 3
        %s148 = sadd.s32 %s146, %s147
        %s149 = smul.addr %s148, 8
        %s150 = scalar_lea.vmem %s1, %s149
      $region20: #{tutte_predicting_normal_forward.1} parent=15 // pred_fallthru
        _
    $region16: #{tutte_predicting_normal_forward.1} parent=5 // pred_fallthru
      _
    %p151 = scmp.le.s32.totalorder 1, %s16
    %p152 = scmp.lt.s32.totalorder %s16, 7
    %p153 = pnand %p151, %p152
    %p154 = pneg %p153
    // Predicated region
    $region21: #{tutte_predicting_normal_forward.1} parent=5 // pred_check
      _
    $region22: #{tutte_predicting_normal_forward.1} parent=5 // pred_check_branch
      %156 = sbr.rel (%p153) target = $region24
    $region23: #{tutte_predicting_normal_forward.1} parent=5 // pred_region
      %s157 = ssub.s32 %s16, 1
      %p158 = scmp.lt.s32.totalorder %s26, 1
      %s159 = scalar_select %p158, %s26, 1
      %p160 = scmp.lt.s32.totalorder %s27, 0
      %s161 = scalar_select %p160, %s27, 0
      %s162 = smul.addr %s159, 3
      %s163 = sadd.s32 %s161, %s162
      %s164 = smul.addr %s163, 8
      %s165 = scalar_lea.vmem %s1, %s164
      %p166 = pneg %p63
      %p167 = pneg %p60
      %p168 = pneg %p93
      %p169 = pneg %p90
      %p170 = scmp.lt.s32.totalorder %s26, 1
      %s171 = scalar_select %p170, %s26, 1
      %p172 = scmp.lt.s32.totalorder %s28, 2
      %s173 = scalar_select %p172, %s28, 2
      %p174 = scmp.lt.s32.totalorder %s27, 0
      %s175 = scalar_select %p174, %s27, 0
      %s176 = smul.addr %s173, 9
      %s177 = sadd.s32 %s175, %s176
      %s178 = smul.addr %s171, 27
      %s179 = sadd.s32 %s177, %s178
      %s180 = smul.addr %s179, 8
      %s181 = scalar_lea.vmem %s2, %s180
      %p182 = pneg %p121
      %p183 = pneg %p118
      %p184 = scmp.lt.s32.totalorder %s26, 1
      %s185 = scalar_select %p184, %s26, 1
      %p186 = scmp.lt.s32.totalorder %s27, 0
      %s187 = scalar_select %p186, %s27, 0
      %s188 = smul.addr %s185, 9
      %s189 = sadd.s32 %s187, %s188
      %s190 = smul.addr %s189, 8
      %s191 = scalar_lea.vmem %s3, %s190
      %p192 = scmp.lt.s32.totalorder %s26, 1
      %s193 = scalar_select %p192, %s26, 1
      %p194 = scmp.lt.s32.totalorder %s27, 0
      %s195 = scalar_select %p194, %s27, 0
      %s196 = smul.addr %s193, 3
      %s197 = sadd.s32 %s195, %s196
      %s198 = smul.addr %s197, 8
      %s199 = scalar_lea.vmem %s1, %s198
      %p200 = scmp.lt.s32.totalorder %s26, 1
      %s201 = scalar_select %p200, %s26, 1
      %p202 = scmp.lt.s32.totalorder %s28, 2
      %s203 = scalar_select %p202, %s28, 2
      %p204 = scmp.lt.s32.totalorder %s27, 0
      %s205 = scalar_select %p204, %s27, 0
      %s206 = smul.addr %s203, 9
      %s207 = sadd.s32 %s205, %s206
      %s208 = smul.addr %s201, 27
      %s209 = sadd.s32 %s207, %s208
      %s210 = smul.addr %s209, 8
      %s211 = scalar_lea.vmem %s2, %s210
      %p212 = scmp.lt.s32.totalorder %s26, 1
      %s213 = scalar_select %p212, %s26, 1
      %p214 = scmp.lt.s32.totalorder %s27, 0
      %s215 = scalar_select %p214, %s27, 0
      %s216 = smul.addr %s213, 9
      %s217 = sadd.s32 %s215, %s216
      %s218 = smul.addr %s217, 8
      %s219 = scalar_lea.vmem %s3, %s218
      %p220 = scmp.eq.s32.totalorder %s28, 0
      // Predicated region
      $region25: #{tutte_predicting_normal_forward.1} parent=23 // pred_check
        %p221 = pneg %p220
      $region26: #{tutte_predicting_normal_forward.1} parent=23 // pred_check_branch
        %223 = sbr.rel (%p221) target = $region28
      $region27: #{tutte_predicting_normal_forward.1} parent=23 // pred_region
        %v224 = vld [vmem:[%s199] sm:$0xff]
        %v225 = vld [vmem:[%s199 + $0x8] sm:$0xff]
        %v226 = vld [vmem:[%s199 + $0x10] sm:$0xff]
        %227 = vst [vmem:[#allocation2] sm:$0xff] %v224
        %228 = vst [vmem:[#allocation2 + $0x8] sm:$0xff] %v225
        %229 = vst [vmem:[#allocation2 + $0x10] sm:$0xff] %v226
      $region28: #{tutte_predicting_normal_forward.1} parent=23 // pred_fallthru
        _
      %s230 = smul.u32 %s26, 3
      %s231 = sadd.s32 %s230, %s28
      %s232 = smul.u32 %s231, 9
      %s233 = sld [smem:[#allocation4 + %s232]]
      %s234 = sadd.s32 %s232, 1
      %s235 = sld [smem:[#allocation4 + %s234]]
      %s236 = sadd.s32 %s232, 2
      %s237 = sld [smem:[#allocation4 + %s236]]
      %s238 = sadd.s32 %s232, 3
      %s239 = sld [smem:[#allocation4 + %s238]]
      %s240 = sadd.s32 %s232, 4
      %s241 = sld [smem:[#allocation4 + %s240]]
      %s242 = sadd.s32 %s232, 5
      %s243 = sld [smem:[#allocation4 + %s242]]
      %s244 = sadd.s32 %s232, 6
      %s245 = sld [smem:[#allocation4 + %s244]]
      %s246 = sadd.s32 %s232, 7
      %s247 = sld [smem:[#allocation4 + %s246]]
      %s248 = sadd.s32 %s232, 8
      %s249 = sld [smem:[#allocation4 + %s248]]
      %v250 = vld [vmem:[#allocation2] sm:$0xff]
      %s251 = scalar_lea.vmem [#allocation2], 8
      %v252 = vld [vmem:[%s251] sm:$0xff]
      %s253 = scalar_lea.vmem [#allocation2], 16
      %v254 = vld [vmem:[%s253] sm:$0xff]
      %v255 = vstv %s233
      %v256 = vmul.f32 %v255, %v250
      %v257 = vstv %s235
      %v258 = vmul.f32 %v257, %v252
      %v259 = vadd.f32 %v256, %v258
      %v260 = vstv %s237
      %v261 = vmul.f32 %v260, %v254
      %v262 = vadd.f32 %v259, %v261
      %v263 = vstv %s239
      %v264 = vmul.f32 %v263, %v250
      %v265 = vstv %s241
      %v266 = vmul.f32 %v265, %v252
      %v267 = vadd.f32 %v264, %v266
      %v268 = vstv %s243
      %v269 = vmul.f32 %v268, %v254
      %v270 = vadd.f32 %v267, %v269
      %v271 = vstv %s245
      %v272 = vmul.f32 %v271, %v250
      %v273 = vstv %s247
      %v274 = vmul.f32 %v273, %v252
      %v275 = vadd.f32 %v272, %v274
      %v276 = vstv %s249
      %v277 = vmul.f32 %v276, %v254
      %v278 = vadd.f32 %v275, %v277
      %v279 = vmul.f32 %v255, %v262
      %v280 = vmul.f32 %v263, %v270
      %v281 = vadd.f32 %v279, %v280
      %v282 = vmul.f32 %v271, %v278
      %v283 = vadd.f32 %v281, %v282
      %v284 = vmul.f32 %v257, %v262
      %v285 = vmul.f32 %v265, %v270
      %v286 = vadd.f32 %v284, %v285
      %v287 = vmul.f32 %v273, %v278
      %v288 = vadd.f32 %v286, %v287
      %v289 = vmul.f32 %v260, %v262
      %v290 = vmul.f32 %v268, %v270
      %v291 = vadd.f32 %v289, %v290
      %v292 = vmul.f32 %v276, %v278
      %v293 = vadd.f32 %v291, %v292
      %294 = vst [vmem:[#allocation2] sm:$0xff] %v283
      %295 = vst [vmem:[%s211] sm:$0xff] %v283
      %296 = vst [vmem:[%s251] sm:$0xff] %v288
      %s297 = scalar_lea.vmem %s211, 8
      %298 = vst [vmem:[%s297] sm:$0xff] %v288
      %299 = vst [vmem:[%s253] sm:$0xff] %v293
      %s300 = scalar_lea.vmem %s211, 16
      %301 = vst [vmem:[%s300] sm:$0xff] %v293
      %s302 = scalar_lea.vmem %s211, 24
      %303 = vst [vmem:[%s302] sm:$0xff] %v262
      %s304 = scalar_lea.vmem %s211, 32
      %305 = vst [vmem:[%s304] sm:$0xff] %v270
      %s306 = scalar_lea.vmem %s211, 40
      %307 = vst [vmem:[%s306] sm:$0xff] 1.0
      %s308 = scalar_lea.vmem %s211, 48
      %309 = vst [vmem:[%s308] sm:$0xff] 0.0
      %s310 = scalar_lea.vmem %s211, 56
      %311 = vst [vmem:[%s310] sm:$0xff] 0.0
      %s312 = scalar_lea.vmem %s211, 64
      %313 = vst [vmem:[%s312] sm:$0xff] 1.0
      %v314 = vmul.f32 %v263, 0.0
      %v315 = vadd.f32 %v255, %v314
      %v316 = vmul.f32 %v265, 0.0
      %v317 = vadd.f32 %v257, %v316
      %v318 = vmul.f32 %v268, 0.0
      %v319 = vadd.f32 %v260, %v318
      %v320 = vmul.f32 %v255, 0.0
      %v321 = vadd.f32 %v320, %v263
      %v322 = vmul.f32 %v257, 0.0
      %v323 = vadd.f32 %v322, %v265
      %v324 = vmul.f32 %v260, 0.0
      %v325 = vadd.f32 %v324, %v268
      %v326 = vmul.f32 %v255, %v315
      %v327 = vmul.f32 %v263, %v321
      %v328 = vadd.f32 %v326, %v327
      %s329 = smul.f32 %s245, %s245
      %v330 = vstv %s329
      %v331 = vadd.f32 %v328, %v330
      %v332 = vmul.f32 %v255, %v317
      %v333 = vmul.f32 %v263, %v323
      %v334 = vadd.f32 %v332, %v333
      %s335 = smul.f32 %s245, %s247
      %v336 = vstv %s335
      %v337 = vadd.f32 %v334, %v336
      %v338 = vmul.f32 %v255, %v319
      %v339 = vmul.f32 %v263, %v325
      %v340 = vadd.f32 %v338, %v339
      %s341 = smul.f32 %s245, %s249
      %v342 = vstv %s341
      %v343 = vadd.f32 %v340, %v342
      %v344 = vmul.f32 %v257, %v315
      %v345 = vmul.f32 %v265, %v321
      %v346 = vadd.f32 %v344, %v345
      %v347 = vadd.f32 %v346, %v336
      %v348 = vmul.f32 %v257, %v317
      %v349 = vmul.f32 %v265, %v323
      %v350 = vadd.f32 %v348, %v349
      %s351 = smul.f32 %s247, %s247
      %v352 = vstv %s351
      %v353 = vadd.f32 %v350, %v352
      %v354 = vmul.f32 %v257, %v319
      %v355 = vmul.f32 %v265, %v325
      %v356 = vadd.f32 %v354, %v355
      %s357 = smul.f32 %s247, %s249
      %v358 = vstv %s357
      %v359 = vadd.f32 %v356, %v358
      %v360 = vmul.f32 %v260, %v315
      %v361 = vmul.f32 %v268, %v321
      %v362 = vadd.f32 %v360, %v361
      %v363 = vadd.f32 %v362, %v342
      %v364 = vmul.f32 %v260, %v317
      %v365 = vmul.f32 %v268, %v323
      %v366 = vadd.f32 %v364, %v365
      %v367 = vadd.f32 %v366, %v358
      %v368 = vmul.f32 %v260, %v319
      %v369 = vmul.f32 %v268, %v325
      %v370 = vadd.f32 %v368, %v369
      %s371 = smul.f32 %s249, %s249
      %v372 = vstv %s371
      %v373 = vadd.f32 %v370, %v372
      // Predicated region
      $region29: #{tutte_predicting_normal_forward.1} parent=23 // pred_check
        %p374 = pneg %p220
      $region30: #{tutte_predicting_normal_forward.1} parent=23 // pred_check_branch
        %376 = sbr.rel (%p374) target = $region32
      $region31: #{tutte_predicting_normal_forward.1} parent=23 // pred_region
        %377 = vst [vmem:[%s219] sm:$0xff] %v331
        %s378 = scalar_lea.vmem %s219, 8
        %379 = vst [vmem:[%s378] sm:$0xff] %v337
        %s380 = scalar_lea.vmem %s219, 16
        %381 = vst [vmem:[%s380] sm:$0xff] %v343
        %s382 = scalar_lea.vmem %s219, 24
        %383 = vst [vmem:[%s382] sm:$0xff] %v347
        %s384 = scalar_lea.vmem %s219, 32
        %385 = vst [vmem:[%s384] sm:$0xff] %v353
        %s386 = scalar_lea.vmem %s219, 40
        %387 = vst [vmem:[%s386] sm:$0xff] %v359
        %s388 = scalar_lea.vmem %s219, 48
        %389 = vst [vmem:[%s388] sm:$0xff] %v363
        %s390 = scalar_lea.vmem %s219, 56
        %391 = vst [vmem:[%s390] sm:$0xff] %v367
        %s392 = scalar_lea.vmem %s219, 64
        %393 = vst [vmem:[%s392] sm:$0xff] %v373
      $region32: #{tutte_predicting_normal_forward.1} parent=23 // pred_fallthru
        _
      %p394 = scmp.gt.s32.totalorder %s28, 0
      // Predicated region
      $region33: #{tutte_predicting_normal_forward.1} parent=23 // pred_check
        %p395 = pneg %p394
      $region34: #{tutte_predicting_normal_forward.1} parent=23 // pred_check_branch
        %397 = sbr.rel (%p395) target = $region36
      $region35: #{tutte_predicting_normal_forward.1} parent=23 // pred_region
        %v398 = vld [vmem:[%s219] sm:$0xff]
        %s399 = scalar_lea.vmem %s219, 8
        %v400 = vld [vmem:[%s399] sm:$0xff]
        %s401 = scalar_lea.vmem %s219, 16
        %v402 = vld [vmem:[%s401] sm:$0xff]
        %s403 = scalar_lea.vmem %s219, 24
        %v404 = vld [vmem:[%s403] sm:$0xff]
        %s405 = scalar_lea.vmem %s219, 32
        %v406 = vld [vmem:[%s405] sm:$0xff]
        %s407 = scalar_lea.vmem %s219, 40
        %v408 = vld [vmem:[%s407] sm:$0xff]
        %s409 = scalar_lea.vmem %s219, 48
        %v410 = vld [vmem:[%s409] sm:$0xff]
        %s411 = scalar_lea.vmem %s219, 56
        %v412 = vld [vmem:[%s411] sm:$0xff]
        %s413 = scalar_lea.vmem %s219, 64
        %v414 = vld [vmem:[%s413] sm:$0xff]
        %v415 = vmul.f32 %v331, %v398
        %v416 = vmul.f32 %v337, %v404
        %v417 = vadd.f32 %v415, %v416
        %v418 = vmul.f32 %v343, %v410
        %v419 = vadd.f32 %v417, %v418
        %420 = vst [vmem:[%s219] sm:$0xff] %v419
        %v421 = vmul.f32 %v331, %v400
        %v422 = vmul.f32 %v337, %v406
        %v423 = vadd.f32 %v421, %v422
        %v424 = vmul.f32 %v343, %v412
        %v425 = vadd.f32 %v423, %v424
        %426 = vst [vmem:[%s399] sm:$0xff] %v425
        %v427 = vmul.f32 %v331, %v402
        %v428 = vmul.f32 %v337, %v408
        %v429 = vadd.f32 %v427, %v428
        %v430 = vmul.f32 %v343, %v414
        %v431 = vadd.f32 %v429, %v430
        %432 = vst [vmem:[%s401] sm:$0xff] %v431
        %v433 = vmul.f32 %v347, %v398
        %v434 = vmul.f32 %v353, %v404
        %v435 = vadd.f32 %v433, %v434
        %v436 = vmul.f32 %v359, %v410
        %v437 = vadd.f32 %v435, %v436
        %438 = vst [vmem:[%s403] sm:$0xff] %v437
        %v439 = vmul.f32 %v347, %v400
        %v440 = vmul.f32 %v353, %v406
        %v441 = vadd.f32 %v439, %v440
        %v442 = vmul.f32 %v359, %v412
        %v443 = vadd.f32 %v441, %v442
        %444 = vst [vmem:[%s405] sm:$0xff] %v443
        %v445 = vmul.f32 %v347, %v402
        %v446 = vmul.f32 %v353, %v408
        %v447 = vadd.f32 %v445, %v446
        %v448 = vmul.f32 %v359, %v414
        %v449 = vadd.f32 %v447, %v448
        %450 = vst [vmem:[%s407] sm:$0xff] %v449
        %v451 = vmul.f32 %v363, %v398
        %v452 = vmul.f32 %v367, %v404
        %v453 = vadd.f32 %v451, %v452
        %v454 = vmul.f32 %v373, %v410
        %v455 = vadd.f32 %v453, %v454
        %456 = vst [vmem:[%s409] sm:$0xff] %v455
        %v457 = vmul.f32 %v363, %v400
        %v458 = vmul.f32 %v367, %v406
        %v459 = vadd.f32 %v457, %v458
        %v460 = vmul.f32 %v373, %v412
        %v461 = vadd.f32 %v459, %v460
        %462 = vst [vmem:[%s411] sm:$0xff] %v461
        %v463 = vmul.f32 %v363, %v402
        %v464 = vmul.f32 %v367, %v408
        %v465 = vadd.f32 %v463, %v464
        %v466 = vmul.f32 %v373, %v414
        %v467 = vadd.f32 %v465, %v466
        %468 = vst [vmem:[%s413] sm:$0xff] %v467
      $region36: #{tutte_predicting_normal_forward.1} parent=23 // pred_fallthru
        _
      %p469 = scmp.lt.s32.totalorder %s26, 1
      %s470 = scalar_select %p469, %s26, 1
      %p471 = scmp.lt.s32.totalorder %s28, 2
      %s472 = scalar_select %p471, %s28, 2
      %p473 = scmp.lt.s32.totalorder %s27, 0
      %s474 = scalar_select %p473, %s27, 0
      %s475 = smul.addr %s472, 9
      %s476 = sadd.s32 %s474, %s475
      %s477 = smul.addr %s470, 27
      %s478 = sadd.s32 %s476, %s477
      %s479 = smul.addr %s478, 8
      %s480 = scalar_lea.vmem %s2, %s479
      %p481 = scmp.lt.s32.totalorder %s26, 1
      %s482 = scalar_select %p481, %s26, 1
      %p483 = scmp.lt.s32.totalorder %s27, 0
      %s484 = scalar_select %p483, %s27, 0
      %s485 = smul.addr %s482, 9
      %s486 = sadd.s32 %s484, %s485
      %s487 = smul.addr %s486, 8
      %s488 = scalar_lea.vmem %s3, %s487
      // Predicated region
      $region37: #{tutte_predicting_normal_forward.1} parent=23 // pred_check
        %p489 = pneg %p90
      $region38: #{tutte_predicting_normal_forward.1} parent=23 // pred_check_branch
        %491 = sbr.rel (%p489) target = $region40
      $region39: #{tutte_predicting_normal_forward.1} parent=23 // pred_region
        _
      $region40: #{tutte_predicting_normal_forward.1} parent=23 // pred_fallthru
        _
      // Predicated region
      $region41: #{tutte_predicting_normal_forward.1} parent=23 // pred_check
        %p492 = pneg %p118
      $region42: #{tutte_predicting_normal_forward.1} parent=23 // pred_check_branch
        %494 = sbr.rel (%p492) target = $region44
      $region43: #{tutte_predicting_normal_forward.1} parent=23 // pred_region
        _
      $region44: #{tutte_predicting_normal_forward.1} parent=23 // pred_fallthru
        _
    $region24: #{tutte_predicting_normal_forward.1} parent=5 // pred_fallthru
      _
    %p495 = scmp.le.s32.totalorder 2, %s16
    // Predicated region
    $region45: #{tutte_predicting_normal_forward.1} parent=5 // pred_check
      %p496 = pneg %p495
    $region46: #{tutte_predicting_normal_forward.1} parent=5 // pred_check_branch
      %498 = sbr.rel (%p496) target = $region48
    $region47: #{tutte_predicting_normal_forward.1} parent=5 // pred_region
      %s499 = ssub.s32 %s16, 2
      // Predicated region
      $region49: #{tutte_predicting_normal_forward.1} parent=47 // pred_check
        %p500 = pneg %p96
      $region50: #{tutte_predicting_normal_forward.1} parent=47 // pred_check_branch
        %502 = sbr.rel (%p500) target = $region52
      $region51: #{tutte_predicting_normal_forward.1} parent=47 // pred_region
        %p503 = scmp.lt.s32.totalorder %s29, 1
        %s504 = scalar_select %p503, %s29, 1
        %p505 = scmp.lt.s32.totalorder %s31, 2
        %s506 = scalar_select %p505, %s31, 2
        %p507 = scmp.lt.s32.totalorder %s30, 0
        %s508 = scalar_select %p507, %s30, 0
        %s509 = smul.addr %s506, 9
        %s510 = sadd.s32 %s508, %s509
        %s511 = smul.addr %s504, 27
        %s512 = sadd.s32 %s510, %s511
        %s513 = smul.addr %s512, 8
        %s514 = scalar_lea.vmem %s2, %s513
      $region52: #{tutte_predicting_normal_forward.1} parent=47 // pred_fallthru
        _
      // Predicated region
      $region53: #{tutte_predicting_normal_forward.1} parent=47 // pred_check
        %p515 = pneg %p124
      $region54: #{tutte_predicting_normal_forward.1} parent=47 // pred_check_branch
        %517 = sbr.rel (%p515) target = $region56
      $region55: #{tutte_predicting_normal_forward.1} parent=47 // pred_region
        %p518 = scmp.lt.s32.totalorder %s29, 1
        %s519 = scalar_select %p518, %s29, 1
        %p520 = scmp.lt.s32.totalorder %s30, 0
        %s521 = scalar_select %p520, %s30, 0
        %s522 = smul.addr %s519, 9
        %s523 = sadd.s32 %s521, %s522
        %s524 = smul.addr %s523, 8
        %s525 = scalar_lea.vmem %s3, %s524
      $region56: #{tutte_predicting_normal_forward.1} parent=47 // pred_fallthru
        _
    $region48: #{tutte_predicting_normal_forward.1} parent=5 // pred_fallthru
      _
  $region6: #{tutte_predicting_normal_forward.1} parent=0 // loop_footer
    %s20 = sadd.s32 1, %s16
  $region7: #{tutte_predicting_normal_forward.1} parent=0 // loop_footer_branch
    %15 = sbr.rel target = $region3
  $region8: #{tutte_predicting_normal_forward.1} parent=0 // loop_exit
    _

</llo_original>
